<compile_context>
chip_gen: v6e
topology: v6e:2x2x1
jax: 0.10.0
libtpu: 0.0.40
codegen_flags: <defaults>
</compile_context>

<pallas_src>
import jax
import jax.numpy as jnp
from jax.experimental import pallas as pl
from jax.experimental.pallas import tpu as pltpu


# ------------------------------ Fused kernel --------------------------------
# pooled_ref : [bm, PDp]  patch-mean-pooled image features (compute dtype)
# w_patch    : [PDp, D]   (compute dtype)
# affine     : [8, D] f32 -- row 0: b_patch, row 1: ln_gamma, row 2: ln_beta
# w_proj     : [D, E]     (compute dtype)
# text_ref   : [E, tn]    pre-normalized, transposed, lane-padded text tile
# scale_ref  : [1, 1] f32 in SMEM -- exp(logit_scale)
# outputs    : logits [bm, tn] f32, normalized image embeddings [bm, E] f32
# proj_sc    : [bm, E] compute-dtype scratch holding normalized embeddings
def clip_fused_kernel(pooled_ref, w_patch_ref, affine_ref, w_proj_ref,
                      text_ref, scale_ref, logits_ref, emb_ref, proj_sc):
    j = pl.program_id(1)

    # Image tower is independent of the class-column tile: compute it once
    # per batch block (j == 0), keep it resident in scratch, reuse across j.
    @pl.when(j == 0)
    def _():
        # Patch embedding (patch-mean folded in outside the kernel).
        x = jnp.dot(pooled_ref[...], w_patch_ref[...],
                    preferred_element_type=jnp.float32)              # [bm, D] f32
        aff = affine_ref[...]                                        # [8, D] f32
        x = x + aff[0:1, :]                                          # + b_patch

        # LayerNorm in f32 on the VPU.
        mu = jnp.mean(x, axis=-1, keepdims=True)
        var = jnp.mean((x - mu) * (x - mu), axis=-1, keepdims=True)
        xn = (x - mu) * jax.lax.rsqrt(var + 1e-5)
        xn = xn * aff[1:2, :] + aff[2:3, :]                          # gamma, beta

        # Projection + L2 normalize (f32 accumulate / f32 normalize).
        proj = jnp.dot(xn.astype(w_proj_ref.dtype), w_proj_ref[...],
                       preferred_element_type=jnp.float32)           # [bm, E] f32
        proj_n = proj * jax.lax.rsqrt(
            jnp.sum(proj * proj, axis=-1, keepdims=True) + 1e-12)
        emb_ref[...] = proj_n
        proj_sc[...] = proj_n.astype(proj_sc.dtype)

    # Scaled cosine logits for this class tile: text is already normalized,
    # transposed to [E, tn] and lane-padded, so this is one lane-dense MXU
    # matmul.  exp(logit_scale) is applied in the f32 epilogue.
    logits_ref[...] = scale_ref[0, 0] * jnp.dot(
        proj_sc[...], text_ref[...], preferred_element_type=jnp.float32)


def clip_fused(pooled, w_patch, affine, w_proj, text_ek, scale, *, bm, tn,
               compute_dtype):
    Bp, PDp = pooled.shape
    D = w_patch.shape[1]
    E = w_proj.shape[1]
    Kp = text_ek.shape[1]
    assert Bp % bm == 0 and Kp % tn == 0
    grid = (Bp // bm, Kp // tn)

    # Size the scoped VMEM limit from the actual per-step buffers (with 2x
    # headroom), capped at 48 MiB so it is safe on v7x (64 MiB/TC) too.
    cb = jnp.dtype(compute_dtype).itemsize
    vmem_need = (2 * bm * PDp * cb         # pooled   (double-buffered over i)
                 + PDp * D * cb            # w_patch  (single-buffered)
                 + 8 * D * 4               # affine   (single-buffered)
                 + D * E * cb              # w_proj   (single-buffered)
                 + 2 * E * tn * cb         # text     (double-buffered over j)
                 + 2 * bm * tn * 4         # logits out
                 + 2 * bm * E * 4          # emb out
                 + bm * E * cb)            # proj_n scratch
    vmem_limit = int(min(48 * 2**20, max(2 * vmem_need, 4 * 2**20)))

    const = lambda i, j: (0, 0)
    return pl.pallas_call(
        clip_fused_kernel,
        out_shape=(
            jax.ShapeDtypeStruct((Bp, Kp), jnp.float32),   # logits (padded K)
            jax.ShapeDtypeStruct((Bp, E), jnp.float32),    # normalized image emb
        ),
        grid=grid,
        in_specs=[
            pl.BlockSpec((bm, PDp), lambda i, j: (i, 0)),
            # Constant-index weights: single-buffered (halve weight VMEM).
            pl.BlockSpec((PDp, D), const, pipeline_mode=pl.Buffered(1)),
            pl.BlockSpec((8, D), const, pipeline_mode=pl.Buffered(1)),
            pl.BlockSpec((D, E), const, pipeline_mode=pl.Buffered(1)),
            # Text tile changes with j: keep default double-buffering so the
            # next tile's DMA overlaps this tile's logits matmul.
            pl.BlockSpec((E, tn), lambda i, j: (0, j)),
            pl.BlockSpec(memory_space=pltpu.MemorySpace.SMEM),   # scale scalar
        ],
        out_specs=(
            pl.BlockSpec((bm, tn), lambda i, j: (i, j)),
            pl.BlockSpec((bm, E), lambda i, j: (i, 0)),
        ),
        scratch_shapes=[pltpu.VMEM((bm, E), compute_dtype)],
        compiler_params=pltpu.CompilerParams(
            # Batch blocks are independent ("parallel", megacore split).  The
            # class-column axis reuses proj_n scratch computed at j == 0, so
            # it must stay sequential ("arbitrary").
            dimension_semantics=("parallel", "arbitrary"),
            vmem_limit_bytes=vmem_limit),
    )(pooled, w_patch, affine, w_proj, text_ek, scale)


# ------------------------------ Glue / wrapper -------------------------------
def pool_patches_nchw(x, ph, pw):
    # mean over all non-overlapping patch positions, per within-patch offset.
    # Equivalent to mean_p(extract_patches(x)) (linearity of the patch embed)
    # but reads the image exactly once; no [B, P, C*ph*pw] tensor.
    B, C, H, W = x.shape
    x = x.reshape(B, C, H // ph, ph, W // pw, pw)
    pooled = jnp.mean(x, axis=(2, 4))                 # [B, C, ph, pw]
    return pooled.reshape(B, C * ph * pw)


def _round_up(n, m):
    return ((n + m - 1) // m) * m


def clip_collector_forward(x_nchw, params, compute_dtype=jnp.bfloat16):
    patch = params["patch"]
    B = x_nchw.shape[0]
    K, E = params["text_emb"].shape
    PD, D = params["w_patch"].shape

    # 1) Linearity: mean_p(patches @ W + b) == (mean_p patches) @ W + b.
    pooled = pool_patches_nchw(x_nchw, patch, patch)                   # [B, PD]

    # 2) Lane-pad PD to a multiple of 128 (zero-pad pooled columns and
    #    w_patch rows): numerically exact, unmasked loads, full MXU K dim.
    PDp = _round_up(PD, 128)
    pooled = jnp.pad(pooled, ((0, 0), (0, PDp - PD)))
    w_patch = jnp.pad(params["w_patch"], ((0, PDp - PD), (0, 0)))

    # 3) Input-invariant text work done once: L2 normalize, transpose to
    #    [E, K], lane-pad K, pick a class-column tile width tn.
    t = params["text_emb"].astype(jnp.float32)
    t_n = t * jax.lax.rsqrt(jnp.sum(t * t, axis=-1, keepdims=True) + 1e-12)
    Kp = _round_up(K, 128)
    tn = Kp if Kp <= 512 else 512
    Kp = _round_up(Kp, tn)
    text_ek = jnp.pad(t_n.T, ((0, 0), (0, Kp - K)))                    # [E, Kp]

    # 4) Batch padding / blocking: sublane multiple of 8; 128-row blocks for
    #    big batches (on v6e's 128 MiB VMEM this can be raised to 256-512).
    BM = 128 if B > 128 else max(8, _round_up(B, 8))
    Bp = _round_up(B, BM)
    pooled = jnp.pad(pooled, ((0, Bp - B), (0, 0)))

    # 5) Merge b_patch / ln_gamma / ln_beta into one (8, D) f32 operand.
    affine = jnp.zeros((8, D), jnp.float32)
    affine = affine.at[0].set(params["b_patch"].reshape(D).astype(jnp.float32))
    affine = affine.at[1].set(params["ln_gamma"].reshape(D).astype(jnp.float32))
    affine = affine.at[2].set(params["ln_beta"].reshape(D).astype(jnp.float32))

    # 6) Cast MXU operands to compute_dtype (bf16 by default); the LayerNorm /
    #    normalize math and the logits epilogue stay f32 inside the kernel.
    # TODO(synk): on v7x, text_ek could drop to fp8 (e4m3) for the logits
    # matmul; kept bf16 here since there is no per-generation dispatch.
    pooled_c = pooled.astype(compute_dtype)
    w_patch_c = w_patch.astype(compute_dtype)
    w_proj_c = params["w_proj"].astype(compute_dtype)
    text_c = text_ek.astype(compute_dtype)
    scale = params["logit_scale_exp"].reshape(1, 1).astype(jnp.float32)

    logits_p, emb_p = clip_fused(pooled_c, w_patch_c, affine, w_proj_c,
                                 text_c, scale, bm=BM, tn=tn,
                                 compute_dtype=compute_dtype)

    # Collector semantics: forward(file_name) returns the cached per-image
    # result dict that the inner CLIP teacher produced in collect().
    # TODO(synk): dict-of-results caching / deepcopy / comm.all_gather
    # bookkeeping in CLIP_COLLECTOR has no Pallas equivalent.
    return {"logits": logits_p[:B, :K], "image_embeddings": emb_p[:B]}


# ------------------------------ Pure-JAX reference ---------------------------
def extract_patches_nchw(x, ph, pw):
    B, C, H, W = x.shape
    x = x.reshape(B, C, H // ph, ph, W // pw, pw)
    x = jnp.transpose(x, (0, 2, 4, 1, 3, 5))            # [B, Hp, Wp, C, ph, pw]
    return x.reshape(B, (H // ph) * (W // pw), C * ph * pw)


def reference_forward(x_nchw, params):
    patches = extract_patches_nchw(x_nchw, params["patch"], params["patch"])
    e = jnp.einsum("bpd,de->bpe", patches, params["w_patch"]) + params["b_patch"]
    pooled = jnp.mean(e, axis=1)
    mu = jnp.mean(pooled, axis=-1, keepdims=True)
    var = jnp.mean((pooled - mu) ** 2, axis=-1, keepdims=True)
    xn = (pooled - mu) / jnp.sqrt(var + 1e-5) * params["ln_gamma"] + params["ln_beta"]
    proj = xn @ params["w_proj"]
    proj_n = proj / jnp.sqrt(jnp.sum(proj * proj, axis=-1, keepdims=True) + 1e-12)
    t = params["text_emb"]
    t_n = t / jnp.sqrt(jnp.sum(t * t, axis=-1, keepdims=True) + 1e-12)
    return params["logit_scale_exp"][0, 0] * proj_n @ t_n.T, proj_n


if __name__ == "__main__":
    B, C, H, W = 2, 4, 16, 16
    patch = 4
    PD = C * patch * patch                 # 64
    D = 128                                # embed dim
    E = 128                                # projection dim
    K = 8                                  # number of text classes

    key = jax.random.PRNGKey(0)
    k_x, k_w, k_b, k_g, k_be, k_p, k_t = jax.random.split(key, 7)

    x = jax.random.normal(k_x, (B, C, H, W), dtype=jnp.float32)

    params = {
        "patch": patch,
        "w_patch": jax.random.normal(k_w, (PD, D), dtype=jnp.float32) * 0.02,
        "b_patch": jax.random.normal(k_b, (1, D), dtype=jnp.float32) * 0.01,
        "ln_gamma": jnp.ones((1, D), dtype=jnp.float32)
                    + 0.1 * jax.random.normal(k_g, (1, D), dtype=jnp.float32),
        "ln_beta": 0.1 * jax.random.normal(k_be, (1, D), dtype=jnp.float32),
        "w_proj": jax.random.normal(k_p, (D, E), dtype=jnp.float32) * 0.02,
        "text_emb": jax.random.normal(k_t, (K, E), dtype=jnp.float32),
        "logit_scale_exp": jnp.full((1, 1), jnp.exp(jnp.float32(0.07)),
                                    dtype=jnp.float32),
    }

    ref_logits, ref_emb = reference_forward(x, params)

    # Exact-math path (f32 MXU operands) for tight correctness validation.
    out_f32 = clip_collector_forward(x, params, compute_dtype=jnp.float32)
    jax.block_until_ready(out_f32)
    assert jnp.allclose(out_f32["logits"], ref_logits, atol=1e-4, rtol=1e-4)
    assert jnp.allclose(out_f32["image_embeddings"], ref_emb, atol=1e-4, rtol=1e-4)

    # Production path: bf16 MXU operands, f32 accumulation and f32 epilogue.
    out_bf16 = clip_collector_forward(x, params, compute_dtype=jnp.bfloat16)
    jax.block_until_ready(out_bf16)
    assert jnp.allclose(out_bf16["logits"], ref_logits, atol=3e-2, rtol=3e-2)
    assert jnp.allclose(out_bf16["image_embeddings"], ref_emb, atol=3e-2, rtol=3e-2)

    print("KERNEL_OK")
</pallas_src>

<mosaic_0001>
module attributes {stable_mosaic.version = 11 : i64} {
  func.func @clip_fused_kernel(%arg0: i32, %arg1: i32, %arg2: memref<8x128xf32, #tpu.memory_space<vmem>>, %arg3: memref<128x128xf32, #tpu.memory_space<vmem>>, %arg4: memref<8x128xf32, #tpu.memory_space<vmem>>, %arg5: memref<128x128xf32, #tpu.memory_space<vmem>>, %arg6: memref<128x128xf32, #tpu.memory_space<vmem>>, %arg7: memref<1x1xf32, #tpu.memory_space<smem>>, %arg8: memref<8x128xf32, #tpu.memory_space<vmem>>, %arg9: memref<8x128xf32, #tpu.memory_space<vmem>>, %arg10: memref<8x128xf32, #tpu.memory_space<vmem>>) attributes {dimension_semantics = [#tpu.dimension_semantics<parallel>, #tpu.dimension_semantics<arbitrary>], iteration_bounds = array<i64: 1, 1>, scalar_prefetch = 0 : i64, scratch_operands = 1 : i64, tpu.core_type = #tpu.core_type<tc>, window_params = [{transform_indices = @transform_0, window_bounds = array<i64: 8, 128>}, {pipeline_mode = #tpu.pipeline_mode<synchronous>, transform_indices = @transform_1, window_bounds = array<i64: 128, 128>}, {pipeline_mode = #tpu.pipeline_mode<synchronous>, transform_indices = @transform_2, window_bounds = array<i64: 8, 128>}, {pipeline_mode = #tpu.pipeline_mode<synchronous>, transform_indices = @transform_3, window_bounds = array<i64: 128, 128>}, {transform_indices = @transform_4, window_bounds = array<i64: 128, 128>}, {transform_indices = @transform_5, window_bounds = array<i64: 1, 1>}, {transform_indices = @transform_6, window_bounds = array<i64: 8, 128>}, {transform_indices = @transform_7, window_bounds = array<i64: 8, 128>}]} {
    %c0_i32 = arith.constant 0 : i32
    %0 = arith.cmpi eq, %arg1, %c0_i32 : i32
    %1 = arith.extui %0 : i1 to i32
    %c0_i32_0 = arith.constant 0 : i32
    %2 = arith.cmpi ne, %1, %c0_i32_0 : i32
    scf.if %2 {
      %c0_8 = arith.constant 0 : index
      %c0_9 = arith.constant 0 : index
      %10 = vector.load %arg2[%c0_8, %c0_9] : memref<8x128xf32, #tpu.memory_space<vmem>>, vector<8x128xf32>
      %c0_10 = arith.constant 0 : index
      %c0_11 = arith.constant 0 : index
      %11 = vector.load %arg3[%c0_10, %c0_11] : memref<128x128xf32, #tpu.memory_space<vmem>>, vector<128x128xf32>
      %cst_12 = arith.constant dense<0.000000e+00> : vector<8x128xf32>
      %12 = tpu.matmul %10, %11, %cst_12 {dimension_numbers = #tpu.dot_dimension_numbers<[1], [0], [0], [1], [0, 0, 1, 1], [], []>} : vector<8x128xf32>, vector<128x128xf32>, vector<8x128xf32> -> vector<8x128xf32>
      %c0_13 = arith.constant 0 : index
      %c0_14 = arith.constant 0 : index
      %13 = vector.load %arg4[%c0_13, %c0_14] : memref<8x128xf32, #tpu.memory_space<vmem>>, vector<8x128xf32>
      %14 = vector.extract_strided_slice %13 {offsets = [0, 0], sizes = [1, 128], strides = [1, 1]} : vector<8x128xf32> to vector<1x128xf32>
      %15 = vector.broadcast %14 : vector<1x128xf32> to vector<8x128xf32>
      %16 = arith.addf %12, %15 : vector<8x128xf32>
      %cst_15 = arith.constant dense<0.000000e+00> : vector<8xf32>
      %17 = vector.multi_reduction <add>, %16, %cst_15 [1] : vector<8x128xf32> to vector<8xf32>
      %18 = vector.shape_cast %17 : vector<8xf32> to vector<8x1xf32>
      %cst_16 = arith.constant 1.280000e+02 : f32
      %19 = vector.broadcast %cst_16 : f32 to vector<8x1xf32>
      %20 = arith.divf %18, %19 : vector<8x1xf32>
      %21 = vector.broadcast %20 : vector<8x1xf32> to vector<8x128xf32>
      %22 = arith.subf %16, %21 : vector<8x128xf32>
      %23 = vector.broadcast %20 : vector<8x1xf32> to vector<8x128xf32>
      %24 = arith.subf %16, %23 : vector<8x128xf32>
      %25 = arith.mulf %22, %24 : vector<8x128xf32>
      %cst_17 = arith.constant dense<0.000000e+00> : vector<8xf32>
      %26 = vector.multi_reduction <add>, %25, %cst_17 [1] : vector<8x128xf32> to vector<8xf32>
      %27 = vector.shape_cast %26 : vector<8xf32> to vector<8x1xf32>
      %cst_18 = arith.constant 1.280000e+02 : f32
      %28 = vector.broadcast %cst_18 : f32 to vector<8x1xf32>
      %29 = arith.divf %27, %28 : vector<8x1xf32>
      %30 = vector.broadcast %20 : vector<8x1xf32> to vector<8x128xf32>
      %31 = arith.subf %16, %30 : vector<8x128xf32>
      %cst_19 = arith.constant 9.99999974E-6 : f32
      %32 = vector.broadcast %cst_19 : f32 to vector<8x1xf32>
      %33 = arith.addf %29, %32 : vector<8x1xf32>
      %34 = math.rsqrt %33 : vector<8x1xf32>
      %35 = vector.broadcast %34 : vector<8x1xf32> to vector<8x128xf32>
      %36 = arith.mulf %31, %35 : vector<8x128xf32>
      %37 = vector.extract_strided_slice %13 {offsets = [1, 0], sizes = [1, 128], strides = [1, 1]} : vector<8x128xf32> to vector<1x128xf32>
      %38 = vector.broadcast %37 : vector<1x128xf32> to vector<8x128xf32>
      %39 = arith.mulf %36, %38 : vector<8x128xf32>
      %40 = vector.extract_strided_slice %13 {offsets = [2, 0], sizes = [1, 128], strides = [1, 1]} : vector<8x128xf32> to vector<1x128xf32>
      %41 = vector.broadcast %40 : vector<1x128xf32> to vector<8x128xf32>
      %42 = arith.addf %39, %41 : vector<8x128xf32>
      %c0_20 = arith.constant 0 : index
      %c0_21 = arith.constant 0 : index
      %43 = vector.load %arg5[%c0_20, %c0_21] : memref<128x128xf32, #tpu.memory_space<vmem>>, vector<128x128xf32>
      %cst_22 = arith.constant dense<0.000000e+00> : vector<8x128xf32>
      %44 = tpu.matmul %42, %43, %cst_22 {dimension_numbers = #tpu.dot_dimension_numbers<[1], [0], [0], [1], [0, 0, 1, 1], [], []>} : vector<8x128xf32>, vector<128x128xf32>, vector<8x128xf32> -> vector<8x128xf32>
      %45 = arith.mulf %44, %44 : vector<8x128xf32>
      %cst_23 = arith.constant dense<0.000000e+00> : vector<8xf32>
      %46 = vector.multi_reduction <add>, %45, %cst_23 [1] : vector<8x128xf32> to vector<8xf32>
      %47 = vector.shape_cast %46 : vector<8xf32> to vector<8x1xf32>
      %cst_24 = arith.constant 9.99999996E-13 : f32
      %48 = vector.broadcast %cst_24 : f32 to vector<8x1xf32>
      %49 = arith.addf %47, %48 : vector<8x1xf32>
      %50 = math.rsqrt %49 : vector<8x1xf32>
      %51 = vector.broadcast %50 : vector<8x1xf32> to vector<8x128xf32>
      %52 = arith.mulf %44, %51 : vector<8x128xf32>
      %c0_25 = arith.constant 0 : index
      %c0_26 = arith.constant 0 : index
      %53 = vector.load %arg9[%c0_25, %c0_26] : memref<8x128xf32, #tpu.memory_space<vmem>>, vector<8x128xf32>
      tpu.vector_store %arg9[%c0_25, %c0_26], %52 {strides = array<i32>} : memref<8x128xf32, #tpu.memory_space<vmem>>, vector<8x128xf32>,
      %c0_27 = arith.constant 0 : index
      %c0_28 = arith.constant 0 : index
      %54 = vector.load %arg10[%c0_27, %c0_28] : memref<8x128xf32, #tpu.memory_space<vmem>>, vector<8x128xf32>
      tpu.vector_store %arg10[%c0_27, %c0_28], %52 {strides = array<i32>} : memref<8x128xf32, #tpu.memory_space<vmem>>, vector<8x128xf32>,
    } else {
    }
    %c0 = arith.constant 0 : index
    %c0_1 = arith.constant 0 : index
    %3 = memref.load %arg7[%c0, %c0_1] : memref<1x1xf32, #tpu.memory_space<smem>>
    %c0_2 = arith.constant 0 : index
    %c0_3 = arith.constant 0 : index
    %4 = vector.load %arg10[%c0_2, %c0_3] : memref<8x128xf32, #tpu.memory_space<vmem>>, vector<8x128xf32>
    %c0_4 = arith.constant 0 : index
    %c0_5 = arith.constant 0 : index
    %5 = vector.load %arg6[%c0_4, %c0_5] : memref<128x128xf32, #tpu.memory_space<vmem>>, vector<128x128xf32>
    %cst = arith.constant dense<0.000000e+00> : vector<8x128xf32>
    %6 = tpu.matmul %4, %5, %cst {dimension_numbers = #tpu.dot_dimension_numbers<[1], [0], [0], [1], [0, 0, 1, 1], [], []>} : vector<8x128xf32>, vector<128x128xf32>, vector<8x128xf32> -> vector<8x128xf32>
    %7 = vector.broadcast %3 : f32 to vector<8x128xf32>
    %8 = arith.mulf %7, %6 : vector<8x128xf32>
    %c0_6 = arith.constant 0 : index
    %c0_7 = arith.constant 0 : index
    %9 = vector.load %arg8[%c0_6, %c0_7] : memref<8x128xf32, #tpu.memory_space<vmem>>, vector<8x128xf32>
    tpu.vector_store %arg8[%c0_6, %c0_7], %8 {strides = array<i32>} : memref<8x128xf32, #tpu.memory_space<vmem>>, vector<8x128xf32>,
    return
  }
  func.func @transform_0(%arg0: i32, %arg1: i32) -> (i32, i32) {
    %c0_i32 = arith.constant 0 : i32
    %c0_i32_0 = arith.constant 0 : i32
    return %arg0, %c0_i32 : i32, i32
  }
  func.func @transform_1(%arg0: i32, %arg1: i32) -> (i32, i32) {
    %c0_i32 = arith.constant 0 : i32
    %c0_i32_0 = arith.constant 0 : i32
    %c0_i32_1 = arith.constant 0 : i32
    return %c0_i32, %c0_i32_0 : i32, i32
  }
  func.func @transform_2(%arg0: i32, %arg1: i32) -> (i32, i32) {
    %c0_i32 = arith.constant 0 : i32
    %c0_i32_0 = arith.constant 0 : i32
    %c0_i32_1 = arith.constant 0 : i32
    return %c0_i32, %c0_i32_0 : i32, i32
  }
  func.func @transform_3(%arg0: i32, %arg1: i32) -> (i32, i32) {
    %c0_i32 = arith.constant 0 : i32
    %c0_i32_0 = arith.constant 0 : i32
    %c0_i32_1 = arith.constant 0 : i32
    return %c0_i32, %c0_i32_0 : i32, i32
  }
  func.func @transform_4(%arg0: i32, %arg1: i32) -> (i32, i32) {
    %c0_i32 = arith.constant 0 : i32
    %c0_i32_0 = arith.constant 0 : i32
    return %c0_i32, %arg1 : i32, i32
  }
  func.func @transform_5(%arg0: i32, %arg1: i32) -> (i32, i32) {
    %c0_i32 = arith.constant 0 : i32
    %c0_i32_0 = arith.constant 0 : i32
    %c0_i32_1 = arith.constant 0 : i32
    return %c0_i32, %c0_i32_0 : i32, i32
  }
  func.func @transform_6(%arg0: i32, %arg1: i32) -> (i32, i32) {
    %c0_i32 = arith.constant 0 : i32
    return %arg0, %arg1 : i32, i32
  }
  func.func @transform_7(%arg0: i32, %arg1: i32) -> (i32, i32) {
    %c0_i32 = arith.constant 0 : i32
    %c0_i32_0 = arith.constant 0 : i32
    return %arg0, %c0_i32 : i32, i32
  }
}

</mosaic_0001>

<llo_original>
// kernel: tpu_custom_call.1
$region0: #{tpu_custom_call.1}
  #allocation0 [shape = 'u32[]', space=smem, size = 0x4, offset = 0x4, fixed_abs, tag = 'smem constant byte address 0x4 - core index']
  #allocation1 [shape = 'u32[144,128]{1,0:T(1,128)}', space=vmem, size = 0x12000, scoped, tag = 'internal scratch']
  #allocation2 [shape = 'f32[8,128]{1,0:T(8,128)}', space=vmem, size = 0x1000, scoped, tag = 'scratch operand']
  #allocation3 [shape = 'f32[1,1]{1,0:T(1,128)S(6)}', space=smem, size = 0x200, scoped, tag = 'scoped memory for tpu_custom_call.1']
  %s0 = inlined_call_operand.hbm [shape: f32[8,128], index: 0, kind: input, shape index: {}]
  %s1 = inlined_call_operand.hbm [shape: f32[128,128], index: 1, kind: input, shape index: {}]
  %s2 = inlined_call_operand.hbm [shape: f32[8,128], index: 2, kind: input, shape index: {}]
  %s3 = inlined_call_operand.hbm [shape: f32[128,128], index: 3, kind: input, shape index: {}]
  %s4 = inlined_call_operand.hbm [shape: f32[128,128], index: 4, kind: input, shape index: {}]
  %s5 = inlined_call_operand.<no memory space> [shape: f32[1,1], index: 5, kind: input, shape index: {}]
  %s6 = inlined_call_operand.hbm [shape: f32[8,128], index: 6, kind: output, shape index: {0}]
  %s7 = inlined_call_operand.hbm [shape: f32[8,128], index: 7, kind: output, shape index: {1}]
  %8 = xla_tuple %s6, %s7
  %s9 = sld [smem:[#allocation0]]
  $region66: #{tpu_custom_call.1} parent=0
    _
  %s11 = ssub.s32 1, %s9
  %s12 = scalar_select 0, %s11, %s9
  %13 = sst [smem:[#allocation3]] %s5
  $region1: #{tpu_custom_call.1} parent=0
    #allocation4 [shape = 'u8[4096]{0}', space=vmem, size = 0x1000, scoped, tag = 'input window, operand 0, single buffered']
    #allocation5 [shape = 's32[1]{0}', space=sflag, size = 0x4, scoped, tag = 'scoped memory for tpu_custom_call.1']
    #allocation6 [shape = 's32[1]{0}', space=sflag, size = 0x4, scoped, tag = 'scoped memory for tpu_custom_call.1']
    #allocation7 [shape = 'u8[65536]{0}', space=vmem, size = 0x10000, scoped, tag = 'input window, operand 1, single buffered']
    #allocation8 [shape = 's32[1]{0}', space=sflag, size = 0x4, scoped, tag = 'scoped memory for tpu_custom_call.1']
    #allocation9 [shape = 'u8[4096]{0}', space=vmem, size = 0x1000, scoped, tag = 'input window, operand 2, single buffered']
    #allocation10 [shape = 'u8[65536]{0}', space=vmem, size = 0x10000, scoped, tag = 'input window, operand 3, single buffered']
    #allocation11 [shape = 's32[1]{0}', space=sflag, size = 0x4, scoped, tag = 'scoped memory for tpu_custom_call.1']
    #allocation12 [shape = 'u8[65536]{0}', space=vmem, size = 0x10000, scoped, tag = 'input window, operand 4, single buffered']
    #allocation13 [shape = 'u8[4096]{0}', space=vmem, size = 0x1000, scoped, tag = 'output window, operand 0, single buffered']
    #allocation14 [shape = 'u8[4096]{0}', space=vmem, size = 0x1000, scoped, tag = 'output window, operand 1, single buffered']
    #allocation15 [shape = 's32[1]{0}', space=sflag, size = 0x4, scoped, tag = 'scoped memory for tpu_custom_call.1']
    %14 = vsyncpa [#allocation5], 0
    %15 = vsyncpa [#allocation8], 0
    %16 = vsyncpa [#allocation11], 0
    %17 = vsyncpa [#allocation6], 0
    %18 = vsyncpa [#allocation15], 0
    // Predicated region
    $region2: #{tpu_custom_call.1} parent=1 // pred_check
      _
    $region3: #{tpu_custom_call.1} parent=1 // pred_check_branch
      %20 = sbr.rel (0) target = $region5
    $region4: #{tpu_custom_call.1} parent=1 // pred_region
      %s22 = ssub.s32 128, 128
      %23 = vsyncadd [#allocation5], %s22
      %s25 = sshll.u32 [#allocation4], 4
      %s26 = int_to_ptr.vmem [resolvable:$true] %s25
      %28 = dma.hbm_to_vmem [thread:$0]  %s0, 128, %s26, [#allocation5]
    $region5: #{tpu_custom_call.1} parent=1 // pred_fallthru
      _
    // Predicated region
    $region6: #{tpu_custom_call.1} parent=1 // pred_check
      _
    $region7: #{tpu_custom_call.1} parent=1 // pred_check_branch
      %30 = sbr.rel (0) target = $region9
    $region8: #{tpu_custom_call.1} parent=1 // pred_region
      %s32 = ssub.s32 2048, 2048
      %33 = vsyncadd [#allocation8], %s32
      %s34 = sshll.u32 [#allocation7], 4
      %s35 = int_to_ptr.vmem [resolvable:$true] %s34
      %40 = dma.hbm_to_vmem [thread:$0]  %s1, 2048, %s35, [#allocation8], 128, 128, 8
    $region9: #{tpu_custom_call.1} parent=1 // pred_fallthru
      _
    // Predicated region
    $region10: #{tpu_custom_call.1} parent=1 // pred_check
      _
    $region11: #{tpu_custom_call.1} parent=1 // pred_check_branch
      %42 = sbr.rel (0) target = $region13
    $region12: #{tpu_custom_call.1} parent=1 // pred_region
      %s44 = ssub.s32 128, 128
      %45 = vsyncadd [#allocation8], %s44
      %s47 = sshll.u32 [#allocation9], 4
      %s48 = int_to_ptr.vmem [resolvable:$true] %s47
      %50 = dma.hbm_to_vmem [thread:$0]  %s2, 128, %s48, [#allocation8]
    $region13: #{tpu_custom_call.1} parent=1 // pred_fallthru
      _
    // Predicated region
    $region14: #{tpu_custom_call.1} parent=1 // pred_check
      _
    $region15: #{tpu_custom_call.1} parent=1 // pred_check_branch
      %52 = sbr.rel (0) target = $region17
    $region16: #{tpu_custom_call.1} parent=1 // pred_region
      %s54 = ssub.s32 2048, 2048
      %55 = vsyncadd [#allocation11], %s54
      %s56 = sshll.u32 [#allocation10], 4
      %s57 = int_to_ptr.vmem [resolvable:$true] %s56
      %62 = dma.hbm_to_vmem [thread:$0]  %s3, 2048, %s57, [#allocation11], 128, 128, 8
    $region17: #{tpu_custom_call.1} parent=1 // pred_fallthru
      _
    // Predicated region
    $region18: #{tpu_custom_call.1} parent=1 // pred_check
      _
    $region19: #{tpu_custom_call.1} parent=1 // pred_check_branch
      %64 = sbr.rel (0) target = $region21
    $region20: #{tpu_custom_call.1} parent=1 // pred_region
      %s66 = ssub.s32 2048, 2048
      %67 = vsyncadd [#allocation11], %s66
      %s68 = sshll.u32 [#allocation12], 4
      %s69 = int_to_ptr.vmem [resolvable:$true] %s68
      %74 = dma.hbm_to_vmem [thread:$0]  %s4, 2048, %s69, [#allocation11], 128, 128, 8
    $region21: #{tpu_custom_call.1} parent=1 // pred_fallthru
      _
    // Predicated region
    $region22: #{tpu_custom_call.1} parent=1 // pred_check
      _
    $region23: #{tpu_custom_call.1} parent=1 // pred_check_branch
      %76 = sbr.rel (0) target = $region25
    $region24: #{tpu_custom_call.1} parent=1 // pred_region
      _
    $region25: #{tpu_custom_call.1} parent=1 // pred_fallthru
      _
    // Predicated region
    $region26: #{tpu_custom_call.1} parent=1 // pred_check
      _
    $region27: #{tpu_custom_call.1} parent=1 // pred_check_branch
      %78 = sbr.rel (0) target = $region29
    $region28: #{tpu_custom_call.1} parent=1 // pred_region
      %79 = dma.done [#allocation5], 128
    $region29: #{tpu_custom_call.1} parent=1 // pred_fallthru
      _
    // Predicated region
    $region30: #{tpu_custom_call.1} parent=1 // pred_check
      _
    $region31: #{tpu_custom_call.1} parent=1 // pred_check_branch
      %81 = sbr.rel (0) target = $region33
    $region32: #{tpu_custom_call.1} parent=1 // pred_region
      %82 = dma.done [#allocation8], 2048
    $region33: #{tpu_custom_call.1} parent=1 // pred_fallthru
      _
    // Predicated region
    $region34: #{tpu_custom_call.1} parent=1 // pred_check
      _
    $region35: #{tpu_custom_call.1} parent=1 // pred_check_branch
      %84 = sbr.rel (0) target = $region37
    $region36: #{tpu_custom_call.1} parent=1 // pred_region
      %85 = dma.done [#allocation8], 128
    $region37: #{tpu_custom_call.1} parent=1 // pred_fallthru
      _
    // Predicated region
    $region38: #{tpu_custom_call.1} parent=1 // pred_check
      _
    $region39: #{tpu_custom_call.1} parent=1 // pred_check_branch
      %87 = sbr.rel (0) target = $region41
    $region40: #{tpu_custom_call.1} parent=1 // pred_region
      %88 = dma.done [#allocation11], 2048
    $region41: #{tpu_custom_call.1} parent=1 // pred_fallthru
      _
    // Predicated region
    $region42: #{tpu_custom_call.1} parent=1 // pred_check
      _
    $region43: #{tpu_custom_call.1} parent=1 // pred_check_branch
      %90 = sbr.rel (0) target = $region45
    $region44: #{tpu_custom_call.1} parent=1 // pred_region
      %91 = dma.done [#allocation11], 2048
    $region45: #{tpu_custom_call.1} parent=1 // pred_fallthru
      _
    %p92 = scmp.eq.s32.totalorder 0, 0
    // Predicated region
    $region46: #{tpu_custom_call.1} parent=1 // pred_check
      %p93 = pneg %p92
    $region47: #{tpu_custom_call.1} parent=1 // pred_check_branch
      %95 = sbr.rel (%p93) target = $region49
    $region48: #{tpu_custom_call.1} parent=1 // pred_region
      %v96 = vld [vmem:[#allocation4] sm:$0xff]
      %v97 = vld [vmem:[#allocation7] sm:$0xff]
      %v98 = vld [vmem:[#allocation7 + $0x8] sm:$0xff]
      %v99 = vld [vmem:[#allocation7 + $0x10] sm:$0xff]
      %v100 = vld [vmem:[#allocation7 + $0x18] sm:$0xff]
      %v101 = vld [vmem:[#allocation7 + $0x20] sm:$0xff]
      %v102 = vld [vmem:[#allocation7 + $0x28] sm:$0xff]
      %v103 = vld [vmem:[#allocation7 + $0x30] sm:$0xff]
      %v104 = vld [vmem:[#allocation7 + $0x38] sm:$0xff]
      %v105 = vld [vmem:[#allocation7 + $0x40] sm:$0xff]
      %v106 = vld [vmem:[#allocation7 + $0x48] sm:$0xff]
      %v107 = vld [vmem:[#allocation7 + $0x50] sm:$0xff]
      %v108 = vld [vmem:[#allocation7 + $0x58] sm:$0xff]
      %v109 = vld [vmem:[#allocation7 + $0x60] sm:$0xff]
      %v110 = vld [vmem:[#allocation7 + $0x68] sm:$0xff]
      %v111 = vld [vmem:[#allocation7 + $0x70] sm:$0xff]
      %v112 = vld [vmem:[#allocation7 + $0x78] sm:$0xff]
      %v113 = vld [vmem:[#allocation9] sm:$0xff]
      %v114 = vlaneseq
      %v115 = vshrl.u32 %v114, 7
      %v116 = vsub.s32 0, %v115
      %v117 = vrot.slane %v113, %v116
      %118 = vmatprep.subr.mxu0 0.0
      %119 = vmatpush1.msra.mxu0 %v112
      %120 = vmatprep.subr.mxu0 0.0
      %121 = vmatpush1.msra.mxu0 %v111
      %122 = vmatprep.subr.mxu0 0.0
      %123 = vmatpush1.msra.mxu0 %v110
      %124 = vmatprep.subr.mxu0 0.0
      %125 = vmatpush1.msra.mxu0 %v109
      %126 = vmatprep.subr.mxu0 0.0
      %127 = vmatpush1.msra.mxu0 %v108
      %128 = vmatprep.subr.mxu0 0.0
      %129 = vmatpush1.msra.mxu0 %v107
      %130 = vmatprep.subr.mxu0 0.0
      %131 = vmatpush1.msra.mxu0 %v106
      %132 = vmatprep.subr.mxu0 0.0
      %133 = vmatpush1.msra.mxu0 %v105
      %134 = vmatprep.subr.mxu0 0.0
      %135 = vmatpush1.msra.mxu0 %v104
      %136 = vmatprep.subr.mxu0 0.0
      %137 = vmatpush1.msra.mxu0 %v103
      %138 = vmatprep.subr.mxu0 0.0
      %139 = vmatpush1.msra.mxu0 %v102
      %140 = vmatprep.subr.mxu0 0.0
      %141 = vmatpush1.msra.mxu0 %v101
      %142 = vmatprep.subr.mxu0 0.0
      %143 = vmatpush1.msra.mxu0 %v100
      %144 = vmatprep.subr.mxu0 0.0
      %145 = vmatpush1.msra.mxu0 %v99
      %146 = vmatprep.subr.mxu0 0.0
      %147 = vmatpush1.msra.mxu0 %v98
      %148 = vmatprep.subr.mxu0 0.0
      %149 = vmatpush1.msra.mxu0 %v97
      %150 = vmatprep.subr.mxu0 0.0
      %151 = vmatpush2.msra.mxu0 0.0
      %152 = vmatprep.subr.mxu0 0.0
      %153 = vmatpush2.msra.mxu0 0.0
      %154 = vmatprep.subr.mxu0 0.0
      %155 = vmatpush2.msra.mxu0 0.0
      %156 = vmatprep.subr.mxu0 0.0
      %157 = vmatpush2.msra.mxu0 0.0
      %158 = vmatprep.subr.mxu0 0.0
      %159 = vmatpush2.msra.mxu0 0.0
      %160 = vmatprep.subr.mxu0 0.0
      %161 = vmatpush2.msra.mxu0 0.0
      %162 = vmatprep.subr.mxu0 0.0
      %163 = vmatpush2.msra.mxu0 0.0
      %164 = vmatprep.subr.mxu0 0.0
      %165 = vmatpush2.msra.mxu0 0.0
      %166 = vmatprep.subr.mxu0 0.0
      %167 = vmatpush2.msra.mxu0 0.0
      %168 = vmatprep.subr.mxu0 0.0
      %169 = vmatpush2.msra.mxu0 0.0
      %170 = vmatprep.subr.mxu0 0.0
      %171 = vmatpush2.msra.mxu0 0.0
      %172 = vmatprep.subr.mxu0 0.0
      %173 = vmatpush2.msra.mxu0 0.0
      %174 = vmatprep.subr.mxu0 0.0
      %175 = vmatpush2.msra.mxu0 0.0
      %176 = vmatprep.subr.mxu0 0.0
      %177 = vmatpush2.msra.mxu0 0.0
      %178 = vmatprep.subr.mxu0 0.0
      %179 = vmatpush2.msra.mxu0 0.0
      %180 = vmatprep.subr.mxu0 0.0
      %181 = vmatpush2.msra.mxu0 0.0
      %182 = vmatprep.mubr.f32.mxu0 0.0
      %183 = vmatmul.mubr.f32.gmra.mxu0 %v96
      %v184 = vpop.f32.mrf.mxu0
      %v185 = vadd.f32 %v117, %v184
      %v186 = vpop.f32.mrf.mxu0
      %187 = vdwg.mxu0
      %188 = vadd.xlane.f32.xlu0 %v185
      %v189 = vpop.xlane.xlu0 %188
      %v190 = vrcp.pop 128.0
      %v191 = vmul.f32 %v189, %v190
      %v192 = vsub.f32 %v185, %v191
      %v193 = vmul.f32 %v192, %v192
      %194 = vadd.xlane.f32.xlu0 %v193
      %v195 = vpop.xlane.xlu0 %194
      %v196 = vmul.f32 %v195, %v190
      %v197 = vadd.f32 %v196, 1e-05
      %v198 = vrsqrt.pop %v197
      %v199 = vmul.f32 %v192, %v198
      %v200 = vlaneseq
      %v201 = vshrl.u32 %v200, 7
      %v202 = vsub.s32 1, %v201
      %v203 = vrot.slane %v113, %v202
      %v204 = vmul.f32 %v199, %v203
      %v205 = vlaneseq
      %v206 = vshrl.u32 %v205, 7
      %v207 = vsub.s32 2, %v206
      %v208 = vrot.slane %v113, %v207
      %v209 = vadd.f32 %v204, %v208
      %v210 = vld [vmem:[#allocation10] sm:$0xff]
      %v211 = vld [vmem:[#allocation10 + $0x8] sm:$0xff]
      %v212 = vld [vmem:[#allocation10 + $0x10] sm:$0xff]
      %v213 = vld [vmem:[#allocation10 + $0x18] sm:$0xff]
      %v214 = vld [vmem:[#allocation10 + $0x20] sm:$0xff]
      %v215 = vld [vmem:[#allocation10 + $0x28] sm:$0xff]
      %v216 = vld [vmem:[#allocation10 + $0x30] sm:$0xff]
      %v217 = vld [vmem:[#allocation10 + $0x38] sm:$0xff]
      %v218 = vld [vmem:[#allocation10 + $0x40] sm:$0xff]
      %v219 = vld [vmem:[#allocation10 + $0x48] sm:$0xff]
      %v220 = vld [vmem:[#allocation10 + $0x50] sm:$0xff]
      %v221 = vld [vmem:[#allocation10 + $0x58] sm:$0xff]
      %v222 = vld [vmem:[#allocation10 + $0x60] sm:$0xff]
      %v223 = vld [vmem:[#allocation10 + $0x68] sm:$0xff]
      %v224 = vld [vmem:[#allocation10 + $0x70] sm:$0xff]
      %v225 = vld [vmem:[#allocation10 + $0x78] sm:$0xff]
      %226 = vmatprep.subr.mxu0 0.0
      %227 = vmatpush1.msra.mxu0 %v225
      %228 = vmatprep.subr.mxu0 0.0
      %229 = vmatpush1.msra.mxu0 %v224
      %230 = vmatprep.subr.mxu0 0.0
      %231 = vmatpush1.msra.mxu0 %v223
      %232 = vmatprep.subr.mxu0 0.0
      %233 = vmatpush1.msra.mxu0 %v222
      %234 = vmatprep.subr.mxu0 0.0
      %235 = vmatpush1.msra.mxu0 %v221
      %236 = vmatprep.subr.mxu0 0.0
      %237 = vmatpush1.msra.mxu0 %v220
      %238 = vmatprep.subr.mxu0 0.0
      %239 = vmatpush1.msra.mxu0 %v219
      %240 = vmatprep.subr.mxu0 0.0
      %241 = vmatpush1.msra.mxu0 %v218
      %242 = vmatprep.subr.mxu0 0.0
      %243 = vmatpush1.msra.mxu0 %v217
      %244 = vmatprep.subr.mxu0 0.0
      %245 = vmatpush1.msra.mxu0 %v216
      %246 = vmatprep.subr.mxu0 0.0
      %247 = vmatpush1.msra.mxu0 %v215
      %248 = vmatprep.subr.mxu0 0.0
      %249 = vmatpush1.msra.mxu0 %v214
      %250 = vmatprep.subr.mxu0 0.0
      %251 = vmatpush1.msra.mxu0 %v213
      %252 = vmatprep.subr.mxu0 0.0
      %253 = vmatpush1.msra.mxu0 %v212
      %254 = vmatprep.subr.mxu0 0.0
      %255 = vmatpush1.msra.mxu0 %v211
      %256 = vmatprep.subr.mxu0 0.0
      %257 = vmatpush1.msra.mxu0 %v210
      %258 = vmatprep.subr.mxu0 0.0
      %259 = vmatpush2.msra.mxu0 0.0
      %260 = vmatprep.subr.mxu0 0.0
      %261 = vmatpush2.msra.mxu0 0.0
      %262 = vmatprep.subr.mxu0 0.0
      %263 = vmatpush2.msra.mxu0 0.0
      %264 = vmatprep.subr.mxu0 0.0
      %265 = vmatpush2.msra.mxu0 0.0
      %266 = vmatprep.subr.mxu0 0.0
      %267 = vmatpush2.msra.mxu0 0.0
      %268 = vmatprep.subr.mxu0 0.0
      %269 = vmatpush2.msra.mxu0 0.0
      %270 = vmatprep.subr.mxu0 0.0
      %271 = vmatpush2.msra.mxu0 0.0
      %272 = vmatprep.subr.mxu0 0.0
      %273 = vmatpush2.msra.mxu0 0.0
      %274 = vmatprep.subr.mxu0 0.0
      %275 = vmatpush2.msra.mxu0 0.0
      %276 = vmatprep.subr.mxu0 0.0
      %277 = vmatpush2.msra.mxu0 0.0
      %278 = vmatprep.subr.mxu0 0.0
      %279 = vmatpush2.msra.mxu0 0.0
      %280 = vmatprep.subr.mxu0 0.0
      %281 = vmatpush2.msra.mxu0 0.0
      %282 = vmatprep.subr.mxu0 0.0
      %283 = vmatpush2.msra.mxu0 0.0
      %284 = vmatprep.subr.mxu0 0.0
      %285 = vmatpush2.msra.mxu0 0.0
      %286 = vmatprep.subr.mxu0 0.0
      %287 = vmatpush2.msra.mxu0 0.0
      %288 = vmatprep.subr.mxu0 0.0
      %289 = vmatpush2.msra.mxu0 0.0
      %290 = vmatprep.mubr.f32.mxu0 0.0
      %291 = vmatmul.mubr.f32.gmra.mxu0 %v209
      %v292 = vpop.f32.mrf.mxu0
      %v293 = vadd.f32 0.0, %v292
      %v294 = vpop.f32.mrf.mxu0
      %295 = vdwg.mxu0
      %v296 = vmul.f32 %v293, %v293
      %297 = vadd.xlane.f32.xlu0 %v296
      %v298 = vpop.xlane.xlu0 %297
      %v299 = vadd.f32 %v298, 1e-12
      %v300 = vrsqrt.pop %v299
      %v301 = vmul.f32 %v293, %v300
      %302 = vst [vmem:[#allocation14] sm:$0xff] %v301
      %303 = vst [vmem:[#allocation2] sm:$0xff] %v301
    $region49: #{tpu_custom_call.1} parent=1 // pred_fallthru
      _
    %s304 = sld [smem:[#allocation3]]
    %v305 = vld [vmem:[#allocation2] sm:$0xff]
    %v306 = vld [vmem:[#allocation12] sm:$0xff]
    %v307 = vld [vmem:[#allocation12 + $0x8] sm:$0xff]
    %v308 = vld [vmem:[#allocation12 + $0x10] sm:$0xff]
    %v309 = vld [vmem:[#allocation12 + $0x18] sm:$0xff]
    %v310 = vld [vmem:[#allocation12 + $0x20] sm:$0xff]
    %v311 = vld [vmem:[#allocation12 + $0x28] sm:$0xff]
    %v312 = vld [vmem:[#allocation12 + $0x30] sm:$0xff]
    %v313 = vld [vmem:[#allocation12 + $0x38] sm:$0xff]
    %v314 = vld [vmem:[#allocation12 + $0x40] sm:$0xff]
    %v315 = vld [vmem:[#allocation12 + $0x48] sm:$0xff]
    %v316 = vld [vmem:[#allocation12 + $0x50] sm:$0xff]
    %v317 = vld [vmem:[#allocation12 + $0x58] sm:$0xff]
    %v318 = vld [vmem:[#allocation12 + $0x60] sm:$0xff]
    %v319 = vld [vmem:[#allocation12 + $0x68] sm:$0xff]
    %v320 = vld [vmem:[#allocation12 + $0x70] sm:$0xff]
    %v321 = vld [vmem:[#allocation12 + $0x78] sm:$0xff]
    %322 = vmatprep.subr.mxu0 0.0
    %323 = vmatpush1.msra.mxu0 %v321
    %324 = vmatprep.subr.mxu0 0.0
    %325 = vmatpush1.msra.mxu0 %v320
    %326 = vmatprep.subr.mxu0 0.0
    %327 = vmatpush1.msra.mxu0 %v319
    %328 = vmatprep.subr.mxu0 0.0
    %329 = vmatpush1.msra.mxu0 %v318
    %330 = vmatprep.subr.mxu0 0.0
    %331 = vmatpush1.msra.mxu0 %v317
    %332 = vmatprep.subr.mxu0 0.0
    %333 = vmatpush1.msra.mxu0 %v316
    %334 = vmatprep.subr.mxu0 0.0
    %335 = vmatpush1.msra.mxu0 %v315
    %336 = vmatprep.subr.mxu0 0.0
    %337 = vmatpush1.msra.mxu0 %v314
    %338 = vmatprep.subr.mxu0 0.0
    %339 = vmatpush1.msra.mxu0 %v313
    %340 = vmatprep.subr.mxu0 0.0
    %341 = vmatpush1.msra.mxu0 %v312
    %342 = vmatprep.subr.mxu0 0.0
    %343 = vmatpush1.msra.mxu0 %v311
    %344 = vmatprep.subr.mxu0 0.0
    %345 = vmatpush1.msra.mxu0 %v310
    %346 = vmatprep.subr.mxu0 0.0
    %347 = vmatpush1.msra.mxu0 %v309
    %348 = vmatprep.subr.mxu0 0.0
    %349 = vmatpush1.msra.mxu0 %v308
    %350 = vmatprep.subr.mxu0 0.0
    %351 = vmatpush1.msra.mxu0 %v307
    %352 = vmatprep.subr.mxu0 0.0
    %353 = vmatpush1.msra.mxu0 %v306
    %354 = vmatprep.subr.mxu0 0.0
    %355 = vmatpush2.msra.mxu0 0.0
    %356 = vmatprep.subr.mxu0 0.0
    %357 = vmatpush2.msra.mxu0 0.0
    %358 = vmatprep.subr.mxu0 0.0
    %359 = vmatpush2.msra.mxu0 0.0
    %360 = vmatprep.subr.mxu0 0.0
    %361 = vmatpush2.msra.mxu0 0.0
    %362 = vmatprep.subr.mxu0 0.0
    %363 = vmatpush2.msra.mxu0 0.0
    %364 = vmatprep.subr.mxu0 0.0
    %365 = vmatpush2.msra.mxu0 0.0
    %366 = vmatprep.subr.mxu0 0.0
    %367 = vmatpush2.msra.mxu0 0.0
    %368 = vmatprep.subr.mxu0 0.0
    %369 = vmatpush2.msra.mxu0 0.0
    %370 = vmatprep.subr.mxu0 0.0
    %371 = vmatpush2.msra.mxu0 0.0
    %372 = vmatprep.subr.mxu0 0.0
    %373 = vmatpush2.msra.mxu0 0.0
    %374 = vmatprep.subr.mxu0 0.0
    %375 = vmatpush2.msra.mxu0 0.0
    %376 = vmatprep.subr.mxu0 0.0
    %377 = vmatpush2.msra.mxu0 0.0
    %378 = vmatprep.subr.mxu0 0.0
    %379 = vmatpush2.msra.mxu0 0.0
    %380 = vmatprep.subr.mxu0 0.0
    %381 = vmatpush2.msra.mxu0 0.0
    %382 = vmatprep.subr.mxu0 0.0
    %383 = vmatpush2.msra.mxu0 0.0
    %384 = vmatprep.subr.mxu0 0.0
    %385 = vmatpush2.msra.mxu0 0.0
    %386 = vmatprep.mubr.f32.mxu0 0.0
    %387 = vmatmul.mubr.f32.gmra.mxu0 %v305
    %v388 = vpop.f32.mrf.mxu0
    %v389 = vadd.f32 0.0, %v388
    %v390 = vpop.f32.mrf.mxu0
    %391 = vdwg.mxu0
    %v392 = vstv %s304
    %v393 = vmul.f32 %v392, %v389
    %394 = vst [vmem:[#allocation13] sm:$0xff] %v393
    // Predicated region
    $region50: #{tpu_custom_call.1} parent=1 // pred_check
      _
    $region51: #{tpu_custom_call.1} parent=1 // pred_check_branch
      %396 = sbr.rel (0) target = $region53
    $region52: #{tpu_custom_call.1} parent=1 // pred_region
      %s398 = ssub.s32 128, 128
      %399 = vsyncadd [#allocation6], %s398
      %s401 = sshll.u32 [#allocation13], 4
      %s402 = int_to_ptr.vmem [resolvable:$true] %s401
      %404 = dma.vmem_to_hbm [thread:$0]  %s402, 128, %s6, [#allocation6]
    $region53: #{tpu_custom_call.1} parent=1 // pred_fallthru
      _
    // Predicated region
    $region54: #{tpu_custom_call.1} parent=1 // pred_check
      _
    $region55: #{tpu_custom_call.1} parent=1 // pred_check_branch
      %406 = sbr.rel (0) target = $region57
    $region56: #{tpu_custom_call.1} parent=1 // pred_region
      %s408 = ssub.s32 128, 128
      %409 = vsyncadd [#allocation15], %s408
      %s411 = sshll.u32 [#allocation14], 4
      %s412 = int_to_ptr.vmem [resolvable:$true] %s411
      %414 = dma.vmem_to_hbm [thread:$0]  %s412, 128, %s7, [#allocation15]
    $region57: #{tpu_custom_call.1} parent=1 // pred_fallthru
      _
    // Predicated region
    $region58: #{tpu_custom_call.1} parent=1 // pred_check
      _
    $region59: #{tpu_custom_call.1} parent=1 // pred_check_branch
      %416 = sbr.rel (0) target = $region61
    $region60: #{tpu_custom_call.1} parent=1 // pred_region
      %417 = dma.done [#allocation6], 128
    $region61: #{tpu_custom_call.1} parent=1 // pred_fallthru
      _
    // Predicated region
    $region62: #{tpu_custom_call.1} parent=1 // pred_check
      _
    $region63: #{tpu_custom_call.1} parent=1 // pred_check_branch
      %419 = sbr.rel (0) target = $region65
    $region64: #{tpu_custom_call.1} parent=1 // pred_region
      %420 = dma.done [#allocation15], 128
    $region65: #{tpu_custom_call.1} parent=1 // pred_fallthru
      _
    %421 = vsyncpa [#allocation5], 1
    %422 = vsyncpa [#allocation8], 1
    %423 = vsyncpa [#allocation11], 1
    %424 = vsyncpa [#allocation6], 1
    %425 = vsyncpa [#allocation15], 1

</llo_original>
